<compile_context>
chip_gen: v6e
topology: v6e:2x2x1
jax: 0.10.0
libtpu: 0.0.40
codegen_flags: <defaults>
</compile_context>

<pallas_src>
import functools

import jax
import jax.numpy as jnp
from jax import lax
from jax.experimental import pallas as pl
from jax.experimental.pallas import tpu as pltpu


def _conv_bn_relu(x, w_cat, shift, left0, right0, lanes):
    """One Conv1d(k=3, pad=1) + folded-BN + ReLU layer.

    x:      (Cin, lanes)  activations, lanes = TB * L (batch fused on lanes)
    w_cat:  (Cout, 3*Cin) tap-stacked weights with the BN scale folded in
    shift:  (Cout, 1)     per-channel shift (conv bias + BN affine)
    left0 / right0: (1, lanes) boolean masks of per-item segment boundaries
    """
    # taps: x[l-1] and x[l+1], zeroed at each batch item's segment edge.
    # pltpu.roll only takes non-negative shifts -> roll left == shift lanes-1.
    xm = jnp.where(left0, 0.0, pltpu.roll(x, shift=1, axis=1))            # x[l-1]
    xp = jnp.where(right0, 0.0, pltpu.roll(x, shift=lanes - 1, axis=1))   # x[l+1]
    stacked = jnp.concatenate([xm, x, xp], axis=0)                        # (3*Cin, lanes)
    y = jnp.dot(w_cat, stacked, preferred_element_type=jnp.float32)
    return jnp.maximum(y + shift, 0.0)


def conv_stack_kernel(x_ref,
                      w1_ref, b1_ref,
                      w2_ref, b2_ref,
                      w3_ref, b3_ref,
                      out_ref, *, L):
    lanes = x_ref.shape[-1]
    # One iota + two compares, reused for all six shifts across the 3 layers.
    lane_pos = lax.broadcasted_iota(jnp.int32, (1, lanes), 1) % L
    left0 = lane_pos == 0           # l == 0   within each batch item
    right0 = lane_pos == (L - 1)    # l == L-1 within each batch item

    x = x_ref[...]                                  # (1, lanes)
    y1 = _conv_bn_relu(x, w1_ref[...], b1_ref[...], left0, right0, lanes)   # (16, lanes)
    y2 = _conv_bn_relu(y1, w2_ref[...], b2_ref[...], left0, right0, lanes)  # (32, lanes)
    y3 = _conv_bn_relu(y2, w3_ref[...], b3_ref[...], left0, right0, lanes)  # (16, lanes)
    out_ref[...] = y3


def linear_kernel(x_ref, w_ref, b_ref, o_ref):
    o_ref[...] = (jnp.dot(x_ref[...], w_ref[...],
                          preferred_element_type=jnp.float32) + b_ref[...])


def _pick_batch_tile(B, L, max_lanes=2048):
    """Largest batch tile TB (divisor of B) whose lane width stays VMEM-friendly."""
    if B * L <= max_lanes:
        return B
    for cand in range(B - 1, 0, -1):
        # when splitting, the lane block must be a multiple of 128
        if B % cand == 0 and cand * L <= max_lanes and (cand * L) % 128 == 0:
            return cand
    return B  # fall back to a single (possibly large) tile


def cnn_pa1_forward(x, params):
    B, Cin, L = x.shape
    assert Cin == 1
    (w1c, b1, w2c, b2, w3c, b3, wfc_t, bfc) = params
    N = wfc_t.shape[1]

    TB = _pick_batch_tile(B, L)
    lanes = TB * L
    n_tiles = B // TB

    # (B, 1, L) -> (1, B*L): batch fused onto the lane axis (b-major, l-minor).
    x2 = x.reshape(1, B * L)

    conv_out = pl.pallas_call(
        functools.partial(conv_stack_kernel, L=L),
        out_shape=jax.ShapeDtypeStruct((16, B * L), jnp.float32),
        grid=(n_tiles,),
        in_specs=[
            pl.BlockSpec((1, lanes), lambda i: (0, i)),
            pl.BlockSpec((16, 3), lambda i: (0, 0)),
            pl.BlockSpec((16, 1), lambda i: (0, 0)),
            pl.BlockSpec((32, 48), lambda i: (0, 0)),
            pl.BlockSpec((32, 1), lambda i: (0, 0)),
            pl.BlockSpec((16, 96), lambda i: (0, 0)),
            pl.BlockSpec((16, 1), lambda i: (0, 0)),
        ],
        out_specs=pl.BlockSpec((16, lanes), lambda i: (0, i)),
        compiler_params=pltpu.CompilerParams(dimension_semantics=("parallel",)),
    )(x2, w1c, b1, w2c, b2, w3c, b3)

    # Flatten (JAX glue): (16, B*L) -> (B, 16*L), matching PyTorch x.view(B, -1)
    # on a (B, C, L) tensor.  This intermediate is tiny (16*B*L f32).
    flat = conv_out.reshape(16, B, L).transpose(1, 0, 2).reshape(B, 16 * L)

    out = pl.pallas_call(
        linear_kernel,
        out_shape=jax.ShapeDtypeStruct((B, N), jnp.float32),
        grid=(1,),
        in_specs=[
            pl.BlockSpec((B, 16 * L), lambda i: (0, 0)),
            pl.BlockSpec((16 * L, N), lambda i: (0, 0)),
            pl.BlockSpec((1, N), lambda i: (0, 0)),
        ],
        out_specs=pl.BlockSpec((B, N), lambda i: (0, 0)),
    )(flat, wfc_t, bfc)
    return out


# ---------------------------------------------------------------------------
# Parameter construction (deterministic) and a pure-JAX reference.
# ---------------------------------------------------------------------------
def make_params(key, img_size, num_class):
    ks = jax.random.split(key, 20)
    eps = 1e-5

    def conv_layer(kw, kb, kg, kbeta, km, kv, cout, cin):
        w = jax.random.normal(kw, (cout, cin, 3), jnp.float32) * 0.3   # PyTorch (Cout,Cin,K)
        b = jax.random.normal(kb, (cout,), jnp.float32) * 0.1
        gamma = 1.0 + 0.1 * jax.random.normal(kg, (cout,), jnp.float32)
        beta = 0.1 * jax.random.normal(kbeta, (cout,), jnp.float32)
        mean = 0.1 * jax.random.normal(km, (cout,), jnp.float32)
        var = 1.0 + 0.5 * jax.random.uniform(kv, (cout,), jnp.float32)
        return dict(w=w, b=b, gamma=gamma, beta=beta, mean=mean, var=var, eps=eps)

    c1 = conv_layer(*ks[0:6], 16, 1)
    c2 = conv_layer(*ks[6:12], 32, 16)
    c3 = conv_layer(*ks[12:18], 16, 32)
    wfc = jax.random.normal(ks[18], (num_class, 16 * img_size), jnp.float32) * 0.05
    bfc = jax.random.normal(ks[19], (num_class,), jnp.float32) * 0.1
    raw = dict(c1=c1, c2=c2, c3=c3, wfc=wfc, bfc=bfc)

    def fold(c):
        cout, cin, _ = c["w"].shape
        scale = c["gamma"] / jnp.sqrt(c["var"] + c["eps"])             # (Cout,)
        shift = c["beta"] + (c["b"] - c["mean"]) * scale               # (Cout,)
        # (Cout, Cin, 3) -> tap-major (Cout, 3*Cin): [k=0 | k=1 | k=2] blocks.
        w_cat = jnp.transpose(c["w"], (0, 2, 1)).reshape(cout, 3 * cin)
        w_cat = w_cat * scale[:, None]                                 # fold BN scale
        return w_cat, shift[:, None]

    w1c, b1 = fold(c1)
    w2c, b2 = fold(c2)
    w3c, b3 = fold(c3)
    kernel_params = (w1c, b1, w2c, b2, w3c, b3, wfc.T, bfc[None, :])
    return raw, kernel_params


def ref_forward(x, raw):
    def layer(y, c):
        y = lax.conv_general_dilated(
            y, c["w"], window_strides=(1,), padding=[(1, 1)],
            dimension_numbers=("NCH", "OIH", "NCH"))
        y = y + c["b"][None, :, None]
        y = (y - c["mean"][None, :, None]) / jnp.sqrt(c["var"][None, :, None] + c["eps"])
        y = y * c["gamma"][None, :, None] + c["beta"][None, :, None]
        return jnp.maximum(y, 0.0)

    y = layer(x, raw["c1"])
    y = layer(y, raw["c2"])
    y = layer(y, raw["c3"])
    flat = y.reshape(x.shape[0], -1)
    return flat @ raw["wfc"].T + raw["bfc"]


if __name__ == "__main__":
    B, img_size, num_class = 2, 16, 10
    key = jax.random.PRNGKey(0)
    k_x, k_p = jax.random.split(key)
    x = jax.random.normal(k_x, (B, 1, img_size), jnp.float32)

    raw, kernel_params = make_params(k_p, img_size, num_class)

    out = jax.block_until_ready(cnn_pa1_forward(x, kernel_params))
    ref = jax.block_until_ready(ref_forward(x, raw))

    assert out.shape == (B, num_class), out.shape
    assert jnp.allclose(out, ref, atol=1e-4, rtol=1e-4), (out, ref)
    print("KERNEL_OK")
</pallas_src>

<mosaic_0001>
module attributes {stable_mosaic.version = 11 : i64} {
  func.func @conv_stack_kernel(%arg0: i32, %arg1: memref<1x32xf32, #tpu.memory_space<vmem>>, %arg2: memref<16x3xf32, #tpu.memory_space<vmem>>, %arg3: memref<16x1xf32, #tpu.memory_space<vmem>>, %arg4: memref<32x48xf32, #tpu.memory_space<vmem>>, %arg5: memref<32x1xf32, #tpu.memory_space<vmem>>, %arg6: memref<16x96xf32, #tpu.memory_space<vmem>>, %arg7: memref<16x1xf32, #tpu.memory_space<vmem>>, %arg8: memref<16x32xf32, #tpu.memory_space<vmem>>) attributes {dimension_semantics = [#tpu.dimension_semantics<parallel>], iteration_bounds = array<i64: 1>, scalar_prefetch = 0 : i64, scratch_operands = 0 : i64, tpu.core_type = #tpu.core_type<tc>, window_params = [{transform_indices = @transform_0, window_bounds = array<i64: 1, 32>}, {pipeline_mode = #tpu.pipeline_mode<synchronous>, transform_indices = @transform_1, window_bounds = array<i64: 16, 3>}, {pipeline_mode = #tpu.pipeline_mode<synchronous>, transform_indices = @transform_2, window_bounds = array<i64: 16, 1>}, {pipeline_mode = #tpu.pipeline_mode<synchronous>, transform_indices = @transform_3, window_bounds = array<i64: 32, 48>}, {pipeline_mode = #tpu.pipeline_mode<synchronous>, transform_indices = @transform_4, window_bounds = array<i64: 32, 1>}, {pipeline_mode = #tpu.pipeline_mode<synchronous>, transform_indices = @transform_5, window_bounds = array<i64: 16, 96>}, {pipeline_mode = #tpu.pipeline_mode<synchronous>, transform_indices = @transform_6, window_bounds = array<i64: 16, 1>}, {transform_indices = @transform_7, window_bounds = array<i64: 16, 32>}]} {
    %0 = tpu.iota {dimensions = array<i32: 1>} : vector<1x32xi32>
    %c16_i32 = arith.constant 16 : i32
    %c0_i32 = arith.constant 0 : i32
    %1 = arith.cmpi eq, %c16_i32, %c0_i32 : i32
    %c1_i32 = arith.constant 1 : i32
    %2 = arith.select %1, %c1_i32, %c16_i32 : i32
    %3 = vector.broadcast %2 : i32 to vector<1x32xi32>
    %4 = arith.remsi %0, %3 : vector<1x32xi32>
    %c0_i32_0 = arith.constant 0 : i32
    %5 = vector.broadcast %c0_i32_0 : i32 to vector<1x32xi32>
    %6 = arith.cmpi ne, %4, %5 : vector<1x32xi32>
    %c0_i32_1 = arith.constant 0 : i32
    %7 = vector.broadcast %c0_i32_1 : i32 to vector<1x32xi32>
    %8 = arith.cmpi slt, %4, %7 : vector<1x32xi32>
    %c0_i32_2 = arith.constant 0 : i32
    %9 = arith.cmpi slt, %2, %c0_i32_2 : i32
    %10 = vector.broadcast %9 : i1 to vector<1x32xi1>
    %11 = vector.broadcast %10 : vector<1x32xi1> to vector<1x32xi1>
    %12 = arith.xori %8, %11 : vector<1x32xi1>
    %13 = arith.andi %12, %6 : vector<1x32xi1>
    %14 = vector.broadcast %2 : i32 to vector<1x32xi32>
    %15 = arith.addi %4, %14 : vector<1x32xi32>
    %16 = arith.select %13, %15, %4 : vector<1x32xi1>, vector<1x32xi32>
    %c0_i32_3 = arith.constant 0 : i32
    %17 = vector.broadcast %c0_i32_3 : i32 to vector<1x32xi32>
    %18 = arith.cmpi eq, %16, %17 : vector<1x32xi32>
    %c15_i32 = arith.constant 15 : i32
    %19 = vector.broadcast %c15_i32 : i32 to vector<1x32xi32>
    %20 = arith.cmpi eq, %16, %19 : vector<1x32xi32>
    %c0 = arith.constant 0 : index
    %c0_4 = arith.constant 0 : index
    %21 = vector.load %arg1[%c0, %c0_4] : memref<1x32xf32, #tpu.memory_space<vmem>>, vector<1x32xf32>
    %c0_5 = arith.constant 0 : index
    %c0_6 = arith.constant 0 : index
    %22 = vector.load %arg2[%c0_5, %c0_6] : memref<16x3xf32, #tpu.memory_space<vmem>>, vector<16x3xf32>
    %c0_7 = arith.constant 0 : index
    %c0_8 = arith.constant 0 : index
    %23 = vector.load %arg3[%c0_7, %c0_8] : memref<16x1xf32, #tpu.memory_space<vmem>>, vector<16x1xf32>
    %c1_i32_9 = arith.constant 1 : i32
    %24 = tpu.dynamic_rotate %21 by %c1_i32_9 dim 1 : vector<1x32xf32>, i32 -> vector<1x32xf32>
    %cst = arith.constant 0.000000e+00 : f32
    %25 = vector.broadcast %cst : f32 to vector<1x32xf32>
    %26 = arith.select %18, %25, %24 : vector<1x32xi1>, vector<1x32xf32>
    %c31_i32 = arith.constant 31 : i32
    %27 = tpu.dynamic_rotate %21 by %c31_i32 dim 1 : vector<1x32xf32>, i32 -> vector<1x32xf32>
    %cst_10 = arith.constant 0.000000e+00 : f32
    %28 = vector.broadcast %cst_10 : f32 to vector<1x32xf32>
    %29 = arith.select %20, %28, %27 : vector<1x32xi1>, vector<1x32xf32>
    %30 = tpu.concatenate %26, %21, %29 in 0 : vector<1x32xf32>, vector<1x32xf32>, vector<1x32xf32> -> vector<3x32xf32>
    %cst_11 = arith.constant dense<0.000000e+00> : vector<16x32xf32>
    %31 = tpu.matmul %22, %30, %cst_11 {dimension_numbers = #tpu.dot_dimension_numbers<[1], [0], [0], [1], [0, 0, 1, 1], [], []>} : vector<16x3xf32>, vector<3x32xf32>, vector<16x32xf32> -> vector<16x32xf32>
    %32 = vector.broadcast %23 : vector<16x1xf32> to vector<16x32xf32>
    %33 = arith.addf %31, %32 : vector<16x32xf32>
    %cst_12 = arith.constant 0.000000e+00 : f32
    %34 = vector.broadcast %cst_12 : f32 to vector<16x32xf32>
    %35 = arith.maximumf %33, %34 : vector<16x32xf32>
    %c0_13 = arith.constant 0 : index
    %c0_14 = arith.constant 0 : index
    %36 = vector.load %arg4[%c0_13, %c0_14] : memref<32x48xf32, #tpu.memory_space<vmem>>, vector<32x48xf32>
    %c0_15 = arith.constant 0 : index
    %c0_16 = arith.constant 0 : index
    %37 = vector.load %arg5[%c0_15, %c0_16] : memref<32x1xf32, #tpu.memory_space<vmem>>, vector<32x1xf32>
    %c1_i32_17 = arith.constant 1 : i32
    %38 = tpu.dynamic_rotate %35 by %c1_i32_17 dim 1 : vector<16x32xf32>, i32 -> vector<16x32xf32>
    %cst_18 = arith.constant 0.000000e+00 : f32
    %39 = vector.shape_cast %18 : vector<1x32xi1> to vector<1x32xi1>
    %40 = vector.broadcast %39 : vector<1x32xi1> to vector<16x32xi1>
    %41 = vector.broadcast %cst_18 : f32 to vector<16x32xf32>
    %42 = arith.select %40, %41, %38 : vector<16x32xi1>, vector<16x32xf32>
    %c31_i32_19 = arith.constant 31 : i32
    %43 = tpu.dynamic_rotate %35 by %c31_i32_19 dim 1 : vector<16x32xf32>, i32 -> vector<16x32xf32>
    %cst_20 = arith.constant 0.000000e+00 : f32
    %44 = vector.shape_cast %20 : vector<1x32xi1> to vector<1x32xi1>
    %45 = vector.broadcast %44 : vector<1x32xi1> to vector<16x32xi1>
    %46 = vector.broadcast %cst_20 : f32 to vector<16x32xf32>
    %47 = arith.select %45, %46, %43 : vector<16x32xi1>, vector<16x32xf32>
    %48 = tpu.concatenate %42, %35, %47 in 0 : vector<16x32xf32>, vector<16x32xf32>, vector<16x32xf32> -> vector<48x32xf32>
    %cst_21 = arith.constant dense<0.000000e+00> : vector<32x32xf32>
    %49 = tpu.matmul %36, %48, %cst_21 {dimension_numbers = #tpu.dot_dimension_numbers<[1], [0], [0], [1], [0, 0, 1, 1], [], []>} : vector<32x48xf32>, vector<48x32xf32>, vector<32x32xf32> -> vector<32x32xf32>
    %50 = vector.broadcast %37 : vector<32x1xf32> to vector<32x32xf32>
    %51 = arith.addf %49, %50 : vector<32x32xf32>
    %cst_22 = arith.constant 0.000000e+00 : f32
    %52 = vector.broadcast %cst_22 : f32 to vector<32x32xf32>
    %53 = arith.maximumf %51, %52 : vector<32x32xf32>
    %c0_23 = arith.constant 0 : index
    %c0_24 = arith.constant 0 : index
    %54 = vector.load %arg6[%c0_23, %c0_24] : memref<16x96xf32, #tpu.memory_space<vmem>>, vector<16x96xf32>
    %c0_25 = arith.constant 0 : index
    %c0_26 = arith.constant 0 : index
    %55 = vector.load %arg7[%c0_25, %c0_26] : memref<16x1xf32, #tpu.memory_space<vmem>>, vector<16x1xf32>
    %c1_i32_27 = arith.constant 1 : i32
    %56 = tpu.dynamic_rotate %53 by %c1_i32_27 dim 1 : vector<32x32xf32>, i32 -> vector<32x32xf32>
    %cst_28 = arith.constant 0.000000e+00 : f32
    %57 = vector.shape_cast %18 : vector<1x32xi1> to vector<1x32xi1>
    %58 = vector.broadcast %57 : vector<1x32xi1> to vector<32x32xi1>
    %59 = vector.broadcast %cst_28 : f32 to vector<32x32xf32>
    %60 = arith.select %58, %59, %56 : vector<32x32xi1>, vector<32x32xf32>
    %c31_i32_29 = arith.constant 31 : i32
    %61 = tpu.dynamic_rotate %53 by %c31_i32_29 dim 1 : vector<32x32xf32>, i32 -> vector<32x32xf32>
    %cst_30 = arith.constant 0.000000e+00 : f32
    %62 = vector.shape_cast %20 : vector<1x32xi1> to vector<1x32xi1>
    %63 = vector.broadcast %62 : vector<1x32xi1> to vector<32x32xi1>
    %64 = vector.broadcast %cst_30 : f32 to vector<32x32xf32>
    %65 = arith.select %63, %64, %61 : vector<32x32xi1>, vector<32x32xf32>
    %66 = tpu.concatenate %60, %53, %65 in 0 : vector<32x32xf32>, vector<32x32xf32>, vector<32x32xf32> -> vector<96x32xf32>
    %cst_31 = arith.constant dense<0.000000e+00> : vector<16x32xf32>
    %67 = tpu.matmul %54, %66, %cst_31 {dimension_numbers = #tpu.dot_dimension_numbers<[1], [0], [0], [1], [0, 0, 1, 1], [], []>} : vector<16x96xf32>, vector<96x32xf32>, vector<16x32xf32> -> vector<16x32xf32>
    %68 = vector.broadcast %55 : vector<16x1xf32> to vector<16x32xf32>
    %69 = arith.addf %67, %68 : vector<16x32xf32>
    %cst_32 = arith.constant 0.000000e+00 : f32
    %70 = vector.broadcast %cst_32 : f32 to vector<16x32xf32>
    %71 = arith.maximumf %69, %70 : vector<16x32xf32>
    %c0_33 = arith.constant 0 : index
    %c0_34 = arith.constant 0 : index
    %72 = vector.load %arg8[%c0_33, %c0_34] : memref<16x32xf32, #tpu.memory_space<vmem>>, vector<16x32xf32>
    tpu.vector_store %arg8[%c0_33, %c0_34], %71 {strides = array<i32>} : memref<16x32xf32, #tpu.memory_space<vmem>>, vector<16x32xf32>,
    return
  }
  func.func @transform_0(%arg0: i32) -> (i32, i32) {
    %c0_i32 = arith.constant 0 : i32
    %c0_i32_0 = arith.constant 0 : i32
    return %c0_i32, %arg0 : i32, i32
  }
  func.func @transform_1(%arg0: i32) -> (i32, i32) {
    %c0_i32 = arith.constant 0 : i32
    %c0_i32_0 = arith.constant 0 : i32
    %c0_i32_1 = arith.constant 0 : i32
    return %c0_i32, %c0_i32_0 : i32, i32
  }
  func.func @transform_2(%arg0: i32) -> (i32, i32) {
    %c0_i32 = arith.constant 0 : i32
    %c0_i32_0 = arith.constant 0 : i32
    %c0_i32_1 = arith.constant 0 : i32
    return %c0_i32, %c0_i32_0 : i32, i32
  }
  func.func @transform_3(%arg0: i32) -> (i32, i32) {
    %c0_i32 = arith.constant 0 : i32
    %c0_i32_0 = arith.constant 0 : i32
    %c0_i32_1 = arith.constant 0 : i32
    return %c0_i32, %c0_i32_0 : i32, i32
  }
  func.func @transform_4(%arg0: i32) -> (i32, i32) {
    %c0_i32 = arith.constant 0 : i32
    %c0_i32_0 = arith.constant 0 : i32
    %c0_i32_1 = arith.constant 0 : i32
    return %c0_i32, %c0_i32_0 : i32, i32
  }
  func.func @transform_5(%arg0: i32) -> (i32, i32) {
    %c0_i32 = arith.constant 0 : i32
    %c0_i32_0 = arith.constant 0 : i32
    %c0_i32_1 = arith.constant 0 : i32
    return %c0_i32, %c0_i32_0 : i32, i32
  }
  func.func @transform_6(%arg0: i32) -> (i32, i32) {
    %c0_i32 = arith.constant 0 : i32
    %c0_i32_0 = arith.constant 0 : i32
    %c0_i32_1 = arith.constant 0 : i32
    return %c0_i32, %c0_i32_0 : i32, i32
  }
  func.func @transform_7(%arg0: i32) -> (i32, i32) {
    %c0_i32 = arith.constant 0 : i32
    %c0_i32_0 = arith.constant 0 : i32
    return %c0_i32, %arg0 : i32, i32
  }
}

</mosaic_0001>

<llo_original>
// kernel: tpu_custom_call.1
$region0: #{tpu_custom_call.1}
  #allocation0 [shape = 'u32[]', space=smem, size = 0x4, offset = 0x4, fixed_abs, tag = 'smem constant byte address 0x4 - core index']
  #allocation1 [shape = 'u32[144,128]{1,0:T(1,128)}', space=vmem, size = 0x12000, scoped, tag = 'internal scratch']
  %s0 = inlined_call_operand.vmem [shape: f32[1,32], index: 0, kind: input, shape index: {}]
  %s1 = inlined_call_operand.vmem [shape: f32[16,3], index: 1, kind: input, shape index: {}]
  %s2 = inlined_call_operand.vmem [shape: f32[16,1], index: 2, kind: input, shape index: {}]
  %s3 = inlined_call_operand.vmem [shape: f32[32,48], index: 3, kind: input, shape index: {}]
  %s4 = inlined_call_operand.vmem [shape: f32[32,1], index: 4, kind: input, shape index: {}]
  %s5 = inlined_call_operand.vmem [shape: f32[16,96], index: 5, kind: input, shape index: {}]
  %s6 = inlined_call_operand.vmem [shape: f32[16,1], index: 6, kind: input, shape index: {}]
  %s7 = inlined_call_operand.hbm [shape: f32[16,32], index: 7, kind: output, shape index: {}]
  %s8 = sld [smem:[#allocation0]]
  $region38: #{tpu_custom_call.1} parent=0
    _
  %s10 = ssub.s32 1, %s8
  %s11 = scalar_select 0, %s10, %s8
  $region1: #{tpu_custom_call.1} parent=0
    #allocation2 [shape = 'u8[8192]{0}', space=vmem, size = 0x2000, scoped, tag = 'output window, operand 0, single buffered']
    #allocation3 [shape = 's32[1]{0}', space=sflag, size = 0x4, scoped, tag = 'scoped memory for tpu_custom_call.1']
    %12 = vsyncpa [#allocation3], 0
    // Predicated region
    $region2: #{tpu_custom_call.1} parent=1 // pred_check
      _
    $region3: #{tpu_custom_call.1} parent=1 // pred_check_branch
      %14 = sbr.rel (0) target = $region5
    $region4: #{tpu_custom_call.1} parent=1 // pred_region
      _
    $region5: #{tpu_custom_call.1} parent=1 // pred_fallthru
      _
    // Predicated region
    $region6: #{tpu_custom_call.1} parent=1 // pred_check
      _
    $region7: #{tpu_custom_call.1} parent=1 // pred_check_branch
      %16 = sbr.rel (0) target = $region9
    $region8: #{tpu_custom_call.1} parent=1 // pred_region
      _
    $region9: #{tpu_custom_call.1} parent=1 // pred_fallthru
      _
    // Predicated region
    $region10: #{tpu_custom_call.1} parent=1 // pred_check
      _
    $region11: #{tpu_custom_call.1} parent=1 // pred_check_branch
      %18 = sbr.rel (0) target = $region13
    $region12: #{tpu_custom_call.1} parent=1 // pred_region
      _
    $region13: #{tpu_custom_call.1} parent=1 // pred_fallthru
      _
    // Predicated region
    $region14: #{tpu_custom_call.1} parent=1 // pred_check
      _
    $region15: #{tpu_custom_call.1} parent=1 // pred_check_branch
      %20 = sbr.rel (0) target = $region17
    $region16: #{tpu_custom_call.1} parent=1 // pred_region
      _
    $region17: #{tpu_custom_call.1} parent=1 // pred_fallthru
      _
    // Predicated region
    $region18: #{tpu_custom_call.1} parent=1 // pred_check
      _
    $region19: #{tpu_custom_call.1} parent=1 // pred_check_branch
      %22 = sbr.rel (0) target = $region21
    $region20: #{tpu_custom_call.1} parent=1 // pred_region
      _
    $region21: #{tpu_custom_call.1} parent=1 // pred_fallthru
      _
    // Predicated region
    $region22: #{tpu_custom_call.1} parent=1 // pred_check
      _
    $region23: #{tpu_custom_call.1} parent=1 // pred_check_branch
      %24 = sbr.rel (0) target = $region25
    $region24: #{tpu_custom_call.1} parent=1 // pred_region
      _
    $region25: #{tpu_custom_call.1} parent=1 // pred_fallthru
      _
    // Predicated region
    $region26: #{tpu_custom_call.1} parent=1 // pred_check
      _
    $region27: #{tpu_custom_call.1} parent=1 // pred_check_branch
      %26 = sbr.rel (0) target = $region29
    $region28: #{tpu_custom_call.1} parent=1 // pred_region
      _
    $region29: #{tpu_custom_call.1} parent=1 // pred_fallthru
      _
    %v27 = vlaneseq
    %v28 = vand.u32 %v27, 127
    %vm29 = vcmp.lt.s32.totalorder %v28, 0
    %v30 = vsub.s32 0, %v28
    %v31 = vsel %vm29, %v30, %v28
    %v32 = vshrl.u32 %v31, 4
    %v33 = vand.u32 %v31, 15
    %v34 = vsub.s32 0, %v33
    %v35 = vsel %vm29, %v34, %v33
    %vm36 = vcmp.ne.s32.totalorder %v35, 0
    %vm37 = vcmp.lt.s32.totalorder %v35, 0
    %vm38 = vmand %vm37, %vm36
    %v39 = vadd.s32 %v35, 16
    %v40 = vsel %vm38, %v39, %v35
    %vm41 = vcmp.eq.s32.totalorder %v40, 0
    %vm42 = vcmp.eq.s32.totalorder %v40, 15
    %v43 = vld [vmem:[%s0] sm:$0x1]
    %v44 = vld [vmem:[%s1] sm:$0xff]
    %v45 = vld [vmem:[%s1 + $0x8] sm:$0xff]
    %v46 = vld [vmem:[%s2] sm:$0xff]
    %v47 = vld [vmem:[%s2 + $0x8] sm:$0xff]
    %vm48 = vcmask 1047808
    %49 = vrot.lane.b32.xlu0 %v43, 32
    %v50 = vpop.permute.xlu0 %49
    %v51 = vsel %vm48, %v50, %v43
    %52 = vrot.lane.b32.xlu0 %v51, 32
    %v53 = vpop.permute.xlu0 %52
    %v54 = vsel %vm48, %v53, %v43
    %56 = vrot.lane.b32.xlu0 %v54, 97
    %v57 = vpop.permute.xlu0 %56
    %v59 = vsel %vm41, 0.0, %v57
    %60 = vrot.lane.b32.xlu0 %v54, 127
    %v61 = vpop.permute.xlu0 %60
    %v63 = vsel %vm42, 0.0, %v61
    %v65 = vlaneseq
    %v66 = vshrl.u32 %v65, 7
    %v67 = vsub.s32 0, %v66
    %v68 = vrot.slane %v43, %v67
    %v71 = vrot.slane %v63, 6
    %vm73 = vcmask 1040384
    %v74 = vsel %vm73, %v59, %v68
    %vm75 = vcmask 1041408
    %v76 = vsel %vm75, %v74, %v71
    %78 = vset.pattern.permute.xlu0 0
    %79 = vperm.xlu0 %78, %v46
    %v80 = vpop.permute.xlu0 %79
    %83 = vset.pattern.permute.xlu0 0
    %84 = vperm.xlu0 %83, %v47
    %v85 = vpop.permute.xlu0 %84
    %vm87 = vcmask 23552
    %v89 = vsel %vm87, %v44, 0
    %v92 = vsel %vm87, %v45, 0
    %vm94 = vcmask 1042432
    %v96 = vsel %vm94, %v76, 0
    %98 = vmatprep.subr.mxu0 0.0
    %99 = vmatpush1.msra.mxu0 0.0
    %100 = vmatprep.subr.mxu0 0.0
    %101 = vmatpush1.msra.mxu0 0.0
    %102 = vmatprep.subr.mxu0 0.0
    %103 = vmatpush1.msra.mxu0 0.0
    %104 = vmatprep.subr.mxu0 0.0
    %105 = vmatpush1.msra.mxu0 0.0
    %106 = vmatprep.subr.mxu0 0.0
    %107 = vmatpush1.msra.mxu0 0.0
    %108 = vmatprep.subr.mxu0 0.0
    %109 = vmatpush1.msra.mxu0 0.0
    %110 = vmatprep.subr.mxu0 0.0
    %111 = vmatpush1.msra.mxu0 0.0
    %112 = vmatprep.subr.mxu0 0.0
    %113 = vmatpush1.msra.mxu0 0.0
    %114 = vmatprep.subr.mxu0 0.0
    %115 = vmatpush1.msra.mxu0 0.0
    %116 = vmatprep.subr.mxu0 0.0
    %117 = vmatpush1.msra.mxu0 0.0
    %118 = vmatprep.subr.mxu0 0.0
    %119 = vmatpush1.msra.mxu0 0.0
    %120 = vmatprep.subr.mxu0 0.0
    %121 = vmatpush1.msra.mxu0 0.0
    %122 = vmatprep.subr.mxu0 0.0
    %123 = vmatpush1.msra.mxu0 0.0
    %124 = vmatprep.subr.mxu0 0.0
    %125 = vmatpush1.msra.mxu0 0.0
    %126 = vmatprep.subr.mxu0 0.0
    %127 = vmatpush1.msra.mxu0 0.0
    %128 = vmatprep.subr.mxu0 0.0
    %129 = vmatpush1.msra.mxu0 %v96
    %130 = vmatprep.subr.mxu0 0.0
    %131 = vmatpush2.msra.mxu0 0.0
    %132 = vmatprep.subr.mxu0 0.0
    %133 = vmatpush2.msra.mxu0 0.0
    %134 = vmatprep.subr.mxu0 0.0
    %135 = vmatpush2.msra.mxu0 0.0
    %136 = vmatprep.subr.mxu0 0.0
    %137 = vmatpush2.msra.mxu0 0.0
    %138 = vmatprep.subr.mxu0 0.0
    %139 = vmatpush2.msra.mxu0 0.0
    %140 = vmatprep.subr.mxu0 0.0
    %141 = vmatpush2.msra.mxu0 0.0
    %142 = vmatprep.subr.mxu0 0.0
    %143 = vmatpush2.msra.mxu0 0.0
    %144 = vmatprep.subr.mxu0 0.0
    %145 = vmatpush2.msra.mxu0 0.0
    %146 = vmatprep.subr.mxu0 0.0
    %147 = vmatpush2.msra.mxu0 0.0
    %148 = vmatprep.subr.mxu0 0.0
    %149 = vmatpush2.msra.mxu0 0.0
    %150 = vmatprep.subr.mxu0 0.0
    %151 = vmatpush2.msra.mxu0 0.0
    %152 = vmatprep.subr.mxu0 0.0
    %153 = vmatpush2.msra.mxu0 0.0
    %154 = vmatprep.subr.mxu0 0.0
    %155 = vmatpush2.msra.mxu0 0.0
    %156 = vmatprep.subr.mxu0 0.0
    %157 = vmatpush2.msra.mxu0 0.0
    %158 = vmatprep.subr.mxu0 0.0
    %159 = vmatpush2.msra.mxu0 0.0
    %160 = vmatprep.subr.mxu0 0.0
    %161 = vmatpush2.msra.mxu0 0.0
    %162 = vmatprep.mubr.f32.mxu0 0.0
    %163 = vmatmul.mubr.f32.gmra.mxu0 %v89
    %v164 = vpop.f32.mrf.mxu0
    %v165 = vadd.f32 %v80, %v164
    %v166 = vpop.f32.mrf.mxu0
    %167 = vmatprep.mubr.f32.mxu0 0.0
    %168 = vmatmul.mubr.f32.gmra.mxu0 %v92
    %v169 = vpop.f32.mrf.mxu0
    %v170 = vadd.f32 %v85, %v169
    %v171 = vpop.f32.mrf.mxu0
    %172 = vdwg.mxu0
    %v173 = vmax.f32 %v165, 0.0
    %v174 = vmax.f32 %v170, 0.0
    %v175 = vld [vmem:[%s3] sm:$0xff]
    %v176 = vld [vmem:[%s3 + $0x8] sm:$0xff]
    %v177 = vld [vmem:[%s3 + $0x10] sm:$0xff]
    %v178 = vld [vmem:[%s3 + $0x18] sm:$0xff]
    %v179 = vld [vmem:[%s4] sm:$0xff]
    %v180 = vld [vmem:[%s4 + $0x8] sm:$0xff]
    %v181 = vld [vmem:[%s4 + $0x10] sm:$0xff]
    %v182 = vld [vmem:[%s4 + $0x18] sm:$0xff]
    %183 = vrot.lane.b32.xlu0 %v173, 32
    %v184 = vpop.permute.xlu0 %183
    %v185 = vsel %vm48, %v184, %v173
    %186 = vrot.lane.b32.xlu0 %v174, 32
    %v187 = vpop.permute.xlu0 %186
    %v188 = vsel %vm48, %v187, %v174
    %189 = vrot.lane.b32.xlu0 %v185, 32
    %v190 = vpop.permute.xlu0 %189
    %191 = vrot.lane.b32.xlu0 %v188, 32
    %v192 = vpop.permute.xlu0 %191
    %v193 = vsel %vm48, %v190, %v173
    %v194 = vsel %vm48, %v192, %v174
    %v195 = vsel %vm41, 1, 0
    %vm196 = vcmp.eq.s32.totalorder %v195, 1
    %199 = vrot.lane.b32.xlu0 %v193, 97
    %v200 = vpop.permute.xlu0 %199
    %201 = vrot.lane.b32.xlu0 %v194, 97
    %v202 = vpop.permute.xlu0 %201
    %v205 = vsel %vm196, 0.0, %v200
    %v206 = vsel %vm196, 0.0, %v202
    %v207 = vsel %vm42, 1, 0
    %vm208 = vcmp.eq.s32.totalorder %v207, 1
    %209 = vrot.lane.b32.xlu0 %v193, 127
    %v210 = vpop.permute.xlu0 %209
    %211 = vrot.lane.b32.xlu0 %v194, 127
    %v212 = vpop.permute.xlu0 %211
    %v215 = vsel %vm208, 0.0, %v210
    %v216 = vsel %vm208, 0.0, %v212
    %218 = vset.pattern.permute.xlu0 0
    %219 = vperm.xlu0 %218, %v179
    %v220 = vpop.permute.xlu0 %219
    %223 = vset.pattern.permute.xlu0 0
    %224 = vperm.xlu0 %223, %v180
    %v225 = vpop.permute.xlu0 %224
    %228 = vset.pattern.permute.xlu0 0
    %229 = vperm.xlu0 %228, %v181
    %v230 = vpop.permute.xlu0 %229
    %233 = vset.pattern.permute.xlu0 0
    %234 = vperm.xlu0 %233, %v182
    %v235 = vpop.permute.xlu0 %234
    %vm237 = vcmask 392192
    %v239 = vsel %vm237, %v175, 0
    %v242 = vsel %vm237, %v176, 0
    %v245 = vsel %vm237, %v177, 0
    %v248 = vsel %vm237, %v178, 0
    %250 = vmatprep.subr.mxu0 0.0
    %251 = vmatpush1.msra.mxu0 0.0
    %252 = vmatprep.subr.mxu0 0.0
    %253 = vmatpush1.msra.mxu0 0.0
    %254 = vmatprep.subr.mxu0 0.0
    %255 = vmatpush1.msra.mxu0 0.0
    %256 = vmatprep.subr.mxu0 0.0
    %257 = vmatpush1.msra.mxu0 0.0
    %258 = vmatprep.subr.mxu0 0.0
    %259 = vmatpush1.msra.mxu0 0.0
    %260 = vmatprep.subr.mxu0 0.0
    %261 = vmatpush1.msra.mxu0 0.0
    %262 = vmatprep.subr.mxu0 0.0
    %263 = vmatpush1.msra.mxu0 0.0
    %264 = vmatprep.subr.mxu0 0.0
    %265 = vmatpush1.msra.mxu0 0.0
    %266 = vmatprep.subr.mxu0 0.0
    %267 = vmatpush1.msra.mxu0 0.0
    %268 = vmatprep.subr.mxu0 0.0
    %269 = vmatpush1.msra.mxu0 0.0
    %270 = vmatprep.subr.mxu0 0.0
    %271 = vmatpush1.msra.mxu0 %v216
    %272 = vmatprep.subr.mxu0 0.0
    %273 = vmatpush1.msra.mxu0 %v215
    %274 = vmatprep.subr.mxu0 0.0
    %275 = vmatpush1.msra.mxu0 %v174
    %276 = vmatprep.subr.mxu0 0.0
    %277 = vmatpush1.msra.mxu0 %v173
    %278 = vmatprep.subr.mxu0 0.0
    %279 = vmatpush1.msra.mxu0 %v206
    %280 = vmatprep.subr.mxu0 0.0
    %281 = vmatpush1.msra.mxu0 %v205
    %282 = vmatprep.subr.mxu0 0.0
    %283 = vmatpush2.msra.mxu0 0.0
    %284 = vmatprep.subr.mxu0 0.0
    %285 = vmatpush2.msra.mxu0 0.0
    %286 = vmatprep.subr.mxu0 0.0
    %287 = vmatpush2.msra.mxu0 0.0
    %288 = vmatprep.subr.mxu0 0.0
    %289 = vmatpush2.msra.mxu0 0.0
    %290 = vmatprep.subr.mxu0 0.0
    %291 = vmatpush2.msra.mxu0 0.0
    %292 = vmatprep.subr.mxu0 0.0
    %293 = vmatpush2.msra.mxu0 0.0
    %294 = vmatprep.subr.mxu0 0.0
    %295 = vmatpush2.msra.mxu0 0.0
    %296 = vmatprep.subr.mxu0 0.0
    %297 = vmatpush2.msra.mxu0 0.0
    %298 = vmatprep.subr.mxu0 0.0
    %299 = vmatpush2.msra.mxu0 0.0
    %300 = vmatprep.subr.mxu0 0.0
    %301 = vmatpush2.msra.mxu0 0.0
    %302 = vmatprep.subr.mxu0 0.0
    %303 = vmatpush2.msra.mxu0 0.0
    %304 = vmatprep.subr.mxu0 0.0
    %305 = vmatpush2.msra.mxu0 0.0
    %306 = vmatprep.subr.mxu0 0.0
    %307 = vmatpush2.msra.mxu0 0.0
    %308 = vmatprep.subr.mxu0 0.0
    %309 = vmatpush2.msra.mxu0 0.0
    %310 = vmatprep.subr.mxu0 0.0
    %311 = vmatpush2.msra.mxu0 0.0
    %312 = vmatprep.subr.mxu0 0.0
    %313 = vmatpush2.msra.mxu0 0.0
    %314 = vmatprep.mubr.f32.mxu0 0.0
    %315 = vmatmul.mubr.f32.gmra.mxu0 %v239
    %v316 = vpop.f32.mrf.mxu0
    %v317 = vadd.f32 %v220, %v316
    %v318 = vpop.f32.mrf.mxu0
    %319 = vmatprep.mubr.f32.mxu0 0.0
    %320 = vmatmul.mubr.f32.gmra.mxu0 %v242
    %v321 = vpop.f32.mrf.mxu0
    %v322 = vadd.f32 %v225, %v321
    %v323 = vpop.f32.mrf.mxu0
    %324 = vmatprep.mubr.f32.mxu0 0.0
    %325 = vmatmul.mubr.f32.gmra.mxu0 %v245
    %v326 = vpop.f32.mrf.mxu0
    %v327 = vadd.f32 %v230, %v326
    %v328 = vpop.f32.mrf.mxu0
    %329 = vmatprep.mubr.f32.mxu0 0.0
    %330 = vmatmul.mubr.f32.gmra.mxu0 %v248
    %v331 = vpop.f32.mrf.mxu0
    %v332 = vadd.f32 %v235, %v331
    %v333 = vpop.f32.mrf.mxu0
    %334 = vdwg.mxu0
    %v335 = vmax.f32 %v317, 0.0
    %v336 = vmax.f32 %v322, 0.0
    %v337 = vmax.f32 %v327, 0.0
    %v338 = vmax.f32 %v332, 0.0
    %v339 = vld [vmem:[%s5] sm:$0xff]
    %v340 = vld [vmem:[%s5 + $0x8] sm:$0xff]
    %v341 = vld [vmem:[%s6] sm:$0xff]
    %v342 = vld [vmem:[%s6 + $0x8] sm:$0xff]
    %343 = vrot.lane.b32.xlu0 %v335, 32
    %v344 = vpop.permute.xlu0 %343
    %v345 = vsel %vm48, %v344, %v335
    %346 = vrot.lane.b32.xlu0 %v336, 32
    %v347 = vpop.permute.xlu0 %346
    %v348 = vsel %vm48, %v347, %v336
    %349 = vrot.lane.b32.xlu0 %v337, 32
    %v350 = vpop.permute.xlu0 %349
    %v351 = vsel %vm48, %v350, %v337
    %352 = vrot.lane.b32.xlu0 %v338, 32
    %v353 = vpop.permute.xlu0 %352
    %v354 = vsel %vm48, %v353, %v338
    %355 = vrot.lane.b32.xlu0 %v345, 32
    %v356 = vpop.permute.xlu0 %355
    %357 = vrot.lane.b32.xlu0 %v348, 32
    %v358 = vpop.permute.xlu0 %357
    %359 = vrot.lane.b32.xlu0 %v351, 32
    %v360 = vpop.permute.xlu0 %359
    %361 = vrot.lane.b32.xlu0 %v354, 32
    %v362 = vpop.permute.xlu0 %361
    %v363 = vsel %vm48, %v356, %v335
    %v364 = vsel %vm48, %v358, %v336
    %v365 = vsel %vm48, %v360, %v337
    %v366 = vsel %vm48, %v362, %v338
    %371 = vrot.lane.b32.xlu0 %v363, 97
    %v372 = vpop.permute.xlu0 %371
    %373 = vrot.lane.b32.xlu0 %v364, 97
    %v374 = vpop.permute.xlu0 %373
    %375 = vrot.lane.b32.xlu0 %v365, 97
    %v376 = vpop.permute.xlu0 %375
    %377 = vrot.lane.b32.xlu0 %v366, 97
    %v378 = vpop.permute.xlu0 %377
    %v383 = vsel %vm196, 0.0, %v372
    %v384 = vsel %vm196, 0.0, %v374
    %v385 = vsel %vm196, 0.0, %v376
    %v386 = vsel %vm196, 0.0, %v378
    %387 = vrot.lane.b32.xlu0 %v363, 127
    %v388 = vpop.permute.xlu0 %387
    %389 = vrot.lane.b32.xlu0 %v364, 127
    %v390 = vpop.permute.xlu0 %389
    %391 = vrot.lane.b32.xlu0 %v365, 127
    %v392 = vpop.permute.xlu0 %391
    %393 = vrot.lane.b32.xlu0 %v366, 127
    %v394 = vpop.permute.xlu0 %393
    %v399 = vsel %vm208, 0.0, %v388
    %v400 = vsel %vm208, 0.0, %v390
    %v401 = vsel %vm208, 0.0, %v392
    %v402 = vsel %vm208, 0.0, %v394
    %404 = vset.pattern.permute.xlu0 0
    %405 = vperm.xlu0 %404, %v341
    %v406 = vpop.permute.xlu0 %405
    %409 = vset.pattern.permute.xlu0 0
    %410 = vperm.xlu0 %409, %v342
    %v411 = vpop.permute.xlu0 %410
    %vm413 = vcmask 785408
    %v415 = vsel %vm413, %v339, 0
    %v418 = vsel %vm413, %v340, 0
    %420 = vmatprep.subr.mxu0 0.0
    %421 = vmatpush1.msra.mxu0 0.0
    %422 = vmatprep.subr.mxu0 0.0
    %423 = vmatpush1.msra.mxu0 0.0
    %424 = vmatprep.subr.mxu0 0.0
    %425 = vmatpush1.msra.mxu0 0.0
    %426 = vmatprep.subr.mxu0 0.0
    %427 = vmatpush1.msra.mxu0 0.0
    %428 = vmatprep.subr.mxu0 0.0
    %429 = vmatpush1.msra.mxu0 %v402
    %430 = vmatprep.subr.mxu0 0.0
    %431 = vmatpush1.msra.mxu0 %v401
    %432 = vmatprep.subr.mxu0 0.0
    %433 = vmatpush1.msra.mxu0 %v400
    %434 = vmatprep.subr.mxu0 0.0
    %435 = vmatpush1.msra.mxu0 %v399
    %436 = vmatprep.subr.mxu0 0.0
    %437 = vmatpush1.msra.mxu0 %v338
    %438 = vmatprep.subr.mxu0 0.0
    %439 = vmatpush1.msra.mxu0 %v337
    %440 = vmatprep.subr.mxu0 0.0
    %441 = vmatpush1.msra.mxu0 %v336
    %442 = vmatprep.subr.mxu0 0.0
    %443 = vmatpush1.msra.mxu0 %v335
    %444 = vmatprep.subr.mxu0 0.0
    %445 = vmatpush1.msra.mxu0 %v386
    %446 = vmatprep.subr.mxu0 0.0
    %447 = vmatpush1.msra.mxu0 %v385
    %448 = vmatprep.subr.mxu0 0.0
    %449 = vmatpush1.msra.mxu0 %v384
    %450 = vmatprep.subr.mxu0 0.0
    %451 = vmatpush1.msra.mxu0 %v383
    %452 = vmatprep.subr.mxu0 0.0
    %453 = vmatpush2.msra.mxu0 0.0
    %454 = vmatprep.subr.mxu0 0.0
    %455 = vmatpush2.msra.mxu0 0.0
    %456 = vmatprep.subr.mxu0 0.0
    %457 = vmatpush2.msra.mxu0 0.0
    %458 = vmatprep.subr.mxu0 0.0
    %459 = vmatpush2.msra.mxu0 0.0
    %460 = vmatprep.subr.mxu0 0.0
    %461 = vmatpush2.msra.mxu0 0.0
    %462 = vmatprep.subr.mxu0 0.0
    %463 = vmatpush2.msra.mxu0 0.0
    %464 = vmatprep.subr.mxu0 0.0
    %465 = vmatpush2.msra.mxu0 0.0
    %466 = vmatprep.subr.mxu0 0.0
    %467 = vmatpush2.msra.mxu0 0.0
    %468 = vmatprep.subr.mxu0 0.0
    %469 = vmatpush2.msra.mxu0 0.0
    %470 = vmatprep.subr.mxu0 0.0
    %471 = vmatpush2.msra.mxu0 0.0
    %472 = vmatprep.subr.mxu0 0.0
    %473 = vmatpush2.msra.mxu0 0.0
    %474 = vmatprep.subr.mxu0 0.0
    %475 = vmatpush2.msra.mxu0 0.0
    %476 = vmatprep.subr.mxu0 0.0
    %477 = vmatpush2.msra.mxu0 0.0
    %478 = vmatprep.subr.mxu0 0.0
    %479 = vmatpush2.msra.mxu0 0.0
    %480 = vmatprep.subr.mxu0 0.0
    %481 = vmatpush2.msra.mxu0 0.0
    %482 = vmatprep.subr.mxu0 0.0
    %483 = vmatpush2.msra.mxu0 0.0
    %484 = vmatprep.mubr.f32.mxu0 0.0
    %485 = vmatmul.mubr.f32.gmra.mxu0 %v415
    %v486 = vpop.f32.mrf.mxu0
    %v487 = vadd.f32 %v406, %v486
    %v488 = vpop.f32.mrf.mxu0
    %489 = vmatprep.mubr.f32.mxu0 0.0
    %490 = vmatmul.mubr.f32.gmra.mxu0 %v418
    %v491 = vpop.f32.mrf.mxu0
    %v492 = vadd.f32 %v411, %v491
    %v493 = vpop.f32.mrf.mxu0
    %494 = vdwg.mxu0
    %v495 = vmax.f32 %v487, 0.0
    %v496 = vmax.f32 %v492, 0.0
    %vm497 = vcmask 261120
    %498 = vst.msk [vmem:[#allocation2] sm:$0xff] %vm497, %v495
    %499 = vst.msk [vmem:[#allocation2 + $0x8] sm:$0xff] %vm497, %v496
    // Predicated region
    $region30: #{tpu_custom_call.1} parent=1 // pred_check
      _
    $region31: #{tpu_custom_call.1} parent=1 // pred_check_branch
      %501 = sbr.rel (0) target = $region33
    $region32: #{tpu_custom_call.1} parent=1 // pred_region
      %s503 = ssub.s32 256, 256
      %504 = vsyncadd [#allocation3], %s503
      %s505 = sshll.u32 [#allocation2], 4
      %s506 = int_to_ptr.vmem [resolvable:$true] %s505
      %511 = dma.vmem_to_hbm [thread:$0]  %s506, 256, %s7, [#allocation3], 128, 128, 8
    $region33: #{tpu_custom_call.1} parent=1 // pred_fallthru
      _
    // Predicated region
    $region34: #{tpu_custom_call.1} parent=1 // pred_check
      _
    $region35: #{tpu_custom_call.1} parent=1 // pred_check_branch
      %513 = sbr.rel (0) target = $region37
    $region36: #{tpu_custom_call.1} parent=1 // pred_region
      %514 = dma.done [#allocation3], 256
    $region37: #{tpu_custom_call.1} parent=1 // pred_fallthru
      _
    %515 = vsyncpa [#allocation3], 1

</llo_original>
